<compile_context>
chip_gen: v6e
topology: v6e:2x2x1
jax: 0.10.0
libtpu: 0.0.40
codegen_flags: <defaults>
</compile_context>

<pallas_src>
import jax
import jax.numpy as jnp
from jax.experimental import pallas as pl
from jax.experimental.pallas import tpu as pltpu


def raspp_kernel(x_ref, w1_ref, t1_ref, w2_ref, t2_ref,
                 wp1_ref, wp2_ref, tp_ref, o_ref):
    # x_ref block: (1, Cin, HW); o_ref block: (1, Cout, HW) -- channel major.
    x = x_ref[0]                                   # (Cin, HW) f32
    inv_hw = 1.0 / x.shape[-1]                     # compile-time constant

    # --- branch 1: 1x1 conv (BN scale pre-folded) -> bias -> ReLU6 ---------
    b1 = jnp.dot(w1_ref[...], x, preferred_element_type=jnp.float32)
    b1 = jnp.clip(b1 + t1_ref[...], 0.0, 6.0)      # (Cout, HW)

    # --- branch 2: global avg pool -> 1x1 conv -> bias -> ReLU6 ------------
    # lane-axis (XLU) reduction + constant-reciprocal multiply; the bilinear
    # upsample of the resulting 1x1 map is a pure broadcast, realised below
    # by folding b2 into the projection bias.
    pooled = jnp.sum(x, axis=-1, keepdims=True) * inv_hw      # (Cin, 1)
    b2 = jnp.dot(w2_ref[...], pooled, preferred_element_type=jnp.float32)
    b2 = jnp.clip(b2 + t2_ref[...], 0.0, 6.0)      # (Cout, 1)

    # --- projection on concat([b1, broadcast(b2)]) -------------------------
    # concat + 1x1 conv == wp1 @ b1 + wp2 @ b2; the second term is a (Cout,1)
    # vector, so it is folded into the bias and broadcast along lanes.
    bias = tp_ref[...] + jnp.dot(wp2_ref[...], b2,
                                 preferred_element_type=jnp.float32)
    proj = jnp.dot(wp1_ref[...], b1, preferred_element_type=jnp.float32) + bias
    o_ref[0] = jnp.clip(proj, 0.0, 6.0)
    # TODO(synk): nn.functional.dropout path (drop_rate > 0) not implemented;
    # the module default drop_rate=0 skips it.


def fold_bn(gamma, beta, mean, var, eps=1e-5):
    scale = gamma / jnp.sqrt(var + eps)
    bias = beta - mean * scale
    return scale, bias                              # (C,) each


def raspp_forward(x_nchw, params):
    N, Cin, H, W = x_nchw.shape
    w1, w2, wp = params["w1"], params["w2"], params["wp"]
    Cout = w1.shape[0]
    HW = H * W

    # Fold eval-mode BN into per-output-channel (scale, bias); then fold the
    # scale into the conv weights and keep only a (Cout, 1) bias per conv.
    s1, t1 = fold_bn(*params["bn1"])
    s2, t2 = fold_bn(*params["bn2"])
    sp, tp = fold_bn(*params["bnp"])
    w1f = w1 * s1[:, None]                          # (Cout, Cin)
    w2f = w2 * s2[:, None]                          # (Cout, Cin)
    wpf = wp * sp[:, None]                          # (Cout, 2*Cout)
    wp1f, wp2f = wpf[:, :Cout], wpf[:, Cout:]       # (Cout, Cout) each
    t1c, t2c, tpc = t1[:, None], t2[:, None], tp[:, None]   # (Cout, 1)

    # Channel-major, lane-dense layout: NCHW -> (N, Cin, H*W). Free reshape,
    # no transpose.
    x = x_nchw.reshape(N, Cin, HW)

    def const_spec(shape):
        nd = len(shape)
        return pl.BlockSpec(shape, lambda n, _nd=nd: (0,) * _nd)

    out = pl.pallas_call(
        raspp_kernel,
        out_shape=jax.ShapeDtypeStruct((N, Cout, HW), jnp.float32),
        grid=(N,),
        in_specs=[
            pl.BlockSpec((1, Cin, HW), lambda n: (n, 0, 0)),
            const_spec(w1f.shape), const_spec(t1c.shape),
            const_spec(w2f.shape), const_spec(t2c.shape),
            const_spec(wp1f.shape), const_spec(wp2f.shape),
            const_spec(tpc.shape),
        ],
        out_specs=pl.BlockSpec((1, Cout, HW), lambda n: (n, 0, 0)),
        compiler_params=pltpu.CompilerParams(
            dimension_semantics=("parallel",)),
    )(x, w1f, t1c, w2f, t2c, wp1f, wp2f, tpc)

    return out.reshape(N, Cout, H, W)


# ---------------------------------------------------------------------------
# Parameter construction (deterministic) and a pure-JAX reference for checking
# ---------------------------------------------------------------------------
def make_params(key, cin, cout):
    ks = jax.random.split(key, 6)
    # 1x1 conv weights stored as (out, in) == PyTorch (out, in, 1, 1) squeezed.
    w1 = 0.2 * jax.random.normal(ks[0], (cout, cin), jnp.float32)
    w2 = 0.2 * jax.random.normal(ks[1], (cout, cin), jnp.float32)
    wp = 0.2 * jax.random.normal(ks[2], (cout, 2 * cout), jnp.float32)

    def bn(k, c):
        k0, k1, k2, k3 = jax.random.split(k, 4)
        gamma = 0.5 + jax.random.uniform(k0, (c,), jnp.float32)
        beta = 0.1 * jax.random.normal(k1, (c,), jnp.float32)
        mean = 0.1 * jax.random.normal(k2, (c,), jnp.float32)
        var = 0.5 + jax.random.uniform(k3, (c,), jnp.float32)
        return (gamma, beta, mean, var)

    return dict(w1=w1, w2=w2, wp=wp,
                bn1=bn(ks[3], cout), bn2=bn(ks[4], cout), bnp=bn(ks[5], cout))


def raspp_ref(x_nchw, params):
    # Mirrors the PyTorch module math (un-folded BN, explicit concat).
    s1, t1 = fold_bn(*params["bn1"])
    s2, t2 = fold_bn(*params["bn2"])
    sp, tp = fold_bn(*params["bnp"])
    w1, w2, wp = params["w1"], params["w2"], params["wp"]

    def cb(c):  # per-channel broadcast helper for NCHW
        return c[None, :, None, None]

    b1 = jnp.clip(jnp.einsum('oc,nchw->nohw', w1, x_nchw) * cb(s1) + cb(t1),
                  0.0, 6.0)
    pooled = jnp.mean(x_nchw, axis=(2, 3), keepdims=True)
    b2 = jnp.clip(jnp.einsum('oc,nchw->nohw', w2, pooled) * cb(s2) + cb(t2),
                  0.0, 6.0)
    b2 = jnp.broadcast_to(b2, b1.shape)   # bilinear upsample of 1x1 map
    cat = jnp.concatenate([b1, b2], axis=1)
    out = jnp.clip(jnp.einsum('oc,nchw->nohw', wp, cat) * cb(sp) + cb(tp),
                   0.0, 6.0)
    return out


if __name__ == "__main__":
    N, Cin, H, W = 2, 4, 16, 16
    Cout = 8

    key = jax.random.PRNGKey(0)
    kx, kp = jax.random.split(key)
    x = jax.random.normal(kx, (N, Cin, H, W), jnp.float32)
    params = make_params(kp, Cin, Cout)

    out = jax.block_until_ready(raspp_forward(x, params))
    ref = jax.block_until_ready(raspp_ref(x, params))

    assert out.shape == (N, Cout, H, W), out.shape
    assert jnp.allclose(out, ref, atol=2e-5, rtol=2e-5), \
        float(jnp.max(jnp.abs(out - ref)))
    print("KERNEL_OK")
</pallas_src>

<mosaic_0001>
module attributes {stable_mosaic.version = 11 : i64} {
  func.func @raspp_kernel(%arg0: i32, %arg1: memref<1x4x256xf32, #tpu.memory_space<vmem>>, %arg2: memref<8x4xf32, #tpu.memory_space<vmem>>, %arg3: memref<8x1xf32, #tpu.memory_space<vmem>>, %arg4: memref<8x4xf32, #tpu.memory_space<vmem>>, %arg5: memref<8x1xf32, #tpu.memory_space<vmem>>, %arg6: memref<8x8xf32, #tpu.memory_space<vmem>>, %arg7: memref<8x8xf32, #tpu.memory_space<vmem>>, %arg8: memref<8x1xf32, #tpu.memory_space<vmem>>, %arg9: memref<1x8x256xf32, #tpu.memory_space<vmem>>) attributes {dimension_semantics = [#tpu.dimension_semantics<parallel>], iteration_bounds = array<i64: 2>, scalar_prefetch = 0 : i64, scratch_operands = 0 : i64, tpu.core_type = #tpu.core_type<tc>, window_params = [{transform_indices = @transform_0, window_bounds = array<i64: 1, 4, 256>}, {pipeline_mode = #tpu.pipeline_mode<synchronous>, transform_indices = @transform_1, window_bounds = array<i64: 8, 4>}, {pipeline_mode = #tpu.pipeline_mode<synchronous>, transform_indices = @transform_2, window_bounds = array<i64: 8, 1>}, {pipeline_mode = #tpu.pipeline_mode<synchronous>, transform_indices = @transform_3, window_bounds = array<i64: 8, 4>}, {pipeline_mode = #tpu.pipeline_mode<synchronous>, transform_indices = @transform_4, window_bounds = array<i64: 8, 1>}, {pipeline_mode = #tpu.pipeline_mode<synchronous>, transform_indices = @transform_5, window_bounds = array<i64: 8, 8>}, {pipeline_mode = #tpu.pipeline_mode<synchronous>, transform_indices = @transform_6, window_bounds = array<i64: 8, 8>}, {pipeline_mode = #tpu.pipeline_mode<synchronous>, transform_indices = @transform_7, window_bounds = array<i64: 8, 1>}, {transform_indices = @transform_8, window_bounds = array<i64: 1, 8, 256>}]} {
    %c0 = arith.constant 0 : index
    %c0_0 = arith.constant 0 : index
    %c0_1 = arith.constant 0 : index
    %0 = vector.load %arg1[%c0, %c0_0, %c0_1] : memref<1x4x256xf32, #tpu.memory_space<vmem>>, vector<1x4x256xf32>
    %1 = vector.shape_cast %0 : vector<1x4x256xf32> to vector<4x256xf32>
    %c0_2 = arith.constant 0 : index
    %c0_3 = arith.constant 0 : index
    %2 = vector.load %arg2[%c0_2, %c0_3] : memref<8x4xf32, #tpu.memory_space<vmem>>, vector<8x4xf32>
    %cst = arith.constant dense<0.000000e+00> : vector<8x256xf32>
    %3 = tpu.matmul %2, %1, %cst {dimension_numbers = #tpu.dot_dimension_numbers<[1], [0], [0], [1], [0, 0, 1, 1], [], []>} : vector<8x4xf32>, vector<4x256xf32>, vector<8x256xf32> -> vector<8x256xf32>
    %c0_4 = arith.constant 0 : index
    %c0_5 = arith.constant 0 : index
    %4 = vector.load %arg3[%c0_4, %c0_5] : memref<8x1xf32, #tpu.memory_space<vmem>>, vector<8x1xf32>
    %5 = vector.broadcast %4 : vector<8x1xf32> to vector<8x256xf32>
    %6 = arith.addf %3, %5 : vector<8x256xf32>
    %cst_6 = arith.constant 0.000000e+00 : f32
    %cst_7 = arith.constant 6.000000e+00 : f32
    %7 = vector.broadcast %cst_6 : f32 to vector<8x256xf32>
    %8 = arith.maximumf %7, %6 : vector<8x256xf32>
    %9 = vector.broadcast %cst_7 : f32 to vector<8x256xf32>
    %10 = arith.minimumf %9, %8 : vector<8x256xf32>
    %cst_8 = arith.constant dense<0.000000e+00> : vector<4xf32>
    %11 = vector.multi_reduction <add>, %1, %cst_8 [1] : vector<4x256xf32> to vector<4xf32>
    %12 = vector.shape_cast %11 : vector<4xf32> to vector<4x1xf32>
    %cst_9 = arith.constant 3.906250e-03 : f32
    %13 = vector.broadcast %cst_9 : f32 to vector<4x1xf32>
    %14 = arith.mulf %12, %13 : vector<4x1xf32>
    %c0_10 = arith.constant 0 : index
    %c0_11 = arith.constant 0 : index
    %15 = vector.load %arg4[%c0_10, %c0_11] : memref<8x4xf32, #tpu.memory_space<vmem>>, vector<8x4xf32>
    %cst_12 = arith.constant dense<0.000000e+00> : vector<8x1xf32>
    %16 = tpu.matmul %15, %14, %cst_12 {dimension_numbers = #tpu.dot_dimension_numbers<[1], [0], [0], [1], [0, 0, 1, 1], [], []>} : vector<8x4xf32>, vector<4x1xf32>, vector<8x1xf32> -> vector<8x1xf32>
    %c0_13 = arith.constant 0 : index
    %c0_14 = arith.constant 0 : index
    %17 = vector.load %arg5[%c0_13, %c0_14] : memref<8x1xf32, #tpu.memory_space<vmem>>, vector<8x1xf32>
    %18 = arith.addf %16, %17 : vector<8x1xf32>
    %cst_15 = arith.constant 0.000000e+00 : f32
    %cst_16 = arith.constant 6.000000e+00 : f32
    %19 = vector.broadcast %cst_15 : f32 to vector<8x1xf32>
    %20 = arith.maximumf %19, %18 : vector<8x1xf32>
    %21 = vector.broadcast %cst_16 : f32 to vector<8x1xf32>
    %22 = arith.minimumf %21, %20 : vector<8x1xf32>
    %c0_17 = arith.constant 0 : index
    %c0_18 = arith.constant 0 : index
    %23 = vector.load %arg8[%c0_17, %c0_18] : memref<8x1xf32, #tpu.memory_space<vmem>>, vector<8x1xf32>
    %c0_19 = arith.constant 0 : index
    %c0_20 = arith.constant 0 : index
    %24 = vector.load %arg7[%c0_19, %c0_20] : memref<8x8xf32, #tpu.memory_space<vmem>>, vector<8x8xf32>
    %cst_21 = arith.constant dense<0.000000e+00> : vector<8x1xf32>
    %25 = tpu.matmul %24, %22, %cst_21 {dimension_numbers = #tpu.dot_dimension_numbers<[1], [0], [0], [1], [0, 0, 1, 1], [], []>} : vector<8x8xf32>, vector<8x1xf32>, vector<8x1xf32> -> vector<8x1xf32>
    %26 = arith.addf %23, %25 : vector<8x1xf32>
    %c0_22 = arith.constant 0 : index
    %c0_23 = arith.constant 0 : index
    %27 = vector.load %arg6[%c0_22, %c0_23] : memref<8x8xf32, #tpu.memory_space<vmem>>, vector<8x8xf32>
    %cst_24 = arith.constant dense<0.000000e+00> : vector<8x256xf32>
    %28 = tpu.matmul %27, %10, %cst_24 {dimension_numbers = #tpu.dot_dimension_numbers<[1], [0], [0], [1], [0, 0, 1, 1], [], []>} : vector<8x8xf32>, vector<8x256xf32>, vector<8x256xf32> -> vector<8x256xf32>
    %29 = vector.broadcast %26 : vector<8x1xf32> to vector<8x256xf32>
    %30 = arith.addf %28, %29 : vector<8x256xf32>
    %cst_25 = arith.constant 0.000000e+00 : f32
    %cst_26 = arith.constant 6.000000e+00 : f32
    %31 = vector.broadcast %cst_25 : f32 to vector<8x256xf32>
    %32 = arith.maximumf %31, %30 : vector<8x256xf32>
    %33 = vector.broadcast %cst_26 : f32 to vector<8x256xf32>
    %34 = arith.minimumf %33, %32 : vector<8x256xf32>
    %c0_27 = arith.constant 0 : index
    %c0_28 = arith.constant 0 : index
    %c0_29 = arith.constant 0 : index
    %35 = vector.load %arg9[%c0_27, %c0_28, %c0_29] : memref<1x8x256xf32, #tpu.memory_space<vmem>>, vector<1x8x256xf32>
    %36 = vector.shape_cast %35 : vector<1x8x256xf32> to vector<8x256xf32>
    %37 = vector.shape_cast %34 : vector<8x256xf32> to vector<1x8x256xf32>
    tpu.vector_store %arg9[%c0_27, %c0_28, %c0_29], %37 {strides = array<i32>} : memref<1x8x256xf32, #tpu.memory_space<vmem>>, vector<1x8x256xf32>,
    return
  }
  func.func @transform_0(%arg0: i32) -> (i32, i32, i32) {
    %c0_i32 = arith.constant 0 : i32
    %c0_i32_0 = arith.constant 0 : i32
    %c0_i32_1 = arith.constant 0 : i32
    return %arg0, %c0_i32, %c0_i32_0 : i32, i32, i32
  }
  func.func @transform_1(%arg0: i32) -> (i32, i32) {
    %c0_i32 = arith.constant 0 : i32
    %c0_i32_0 = arith.constant 0 : i32
    %c0_i32_1 = arith.constant 0 : i32
    return %c0_i32, %c0_i32_0 : i32, i32
  }
  func.func @transform_2(%arg0: i32) -> (i32, i32) {
    %c0_i32 = arith.constant 0 : i32
    %c0_i32_0 = arith.constant 0 : i32
    %c0_i32_1 = arith.constant 0 : i32
    return %c0_i32, %c0_i32_0 : i32, i32
  }
  func.func @transform_3(%arg0: i32) -> (i32, i32) {
    %c0_i32 = arith.constant 0 : i32
    %c0_i32_0 = arith.constant 0 : i32
    %c0_i32_1 = arith.constant 0 : i32
    return %c0_i32, %c0_i32_0 : i32, i32
  }
  func.func @transform_4(%arg0: i32) -> (i32, i32) {
    %c0_i32 = arith.constant 0 : i32
    %c0_i32_0 = arith.constant 0 : i32
    %c0_i32_1 = arith.constant 0 : i32
    return %c0_i32, %c0_i32_0 : i32, i32
  }
  func.func @transform_5(%arg0: i32) -> (i32, i32) {
    %c0_i32 = arith.constant 0 : i32
    %c0_i32_0 = arith.constant 0 : i32
    %c0_i32_1 = arith.constant 0 : i32
    return %c0_i32, %c0_i32_0 : i32, i32
  }
  func.func @transform_6(%arg0: i32) -> (i32, i32) {
    %c0_i32 = arith.constant 0 : i32
    %c0_i32_0 = arith.constant 0 : i32
    %c0_i32_1 = arith.constant 0 : i32
    return %c0_i32, %c0_i32_0 : i32, i32
  }
  func.func @transform_7(%arg0: i32) -> (i32, i32) {
    %c0_i32 = arith.constant 0 : i32
    %c0_i32_0 = arith.constant 0 : i32
    %c0_i32_1 = arith.constant 0 : i32
    return %c0_i32, %c0_i32_0 : i32, i32
  }
  func.func @transform_8(%arg0: i32) -> (i32, i32, i32) {
    %c0_i32 = arith.constant 0 : i32
    %c0_i32_0 = arith.constant 0 : i32
    %c0_i32_1 = arith.constant 0 : i32
    return %arg0, %c0_i32, %c0_i32_0 : i32, i32, i32
  }
}

</mosaic_0001>

<llo_original>
// kernel: tpu_custom_call.1
$region0: #{tpu_custom_call.1}
  #allocation0 [shape = 'u32[]', space=smem, size = 0x4, offset = 0x4, fixed_abs, tag = 'smem constant byte address 0x4 - core index']
  #allocation1 [shape = 'u32[144,128]{1,0:T(1,128)}', space=vmem, size = 0x12000, scoped, tag = 'internal scratch']
  %s0 = inlined_call_operand.vmem [shape: f32[2,4,256], index: 0, kind: input, shape index: {}]
  %s1 = inlined_call_operand.vmem [shape: f32[8,4], index: 1, kind: input, shape index: {}]
  %s2 = inlined_call_operand.vmem [shape: f32[8,1], index: 2, kind: input, shape index: {}]
  %s3 = inlined_call_operand.vmem [shape: f32[8,4], index: 3, kind: input, shape index: {}]
  %s4 = inlined_call_operand.vmem [shape: f32[8,1], index: 4, kind: input, shape index: {}]
  %s5 = inlined_call_operand.vmem [shape: f32[8,8], index: 5, kind: input, shape index: {}]
  %s6 = inlined_call_operand.vmem [shape: f32[8,8], index: 6, kind: input, shape index: {}]
  %s7 = inlined_call_operand.vmem [shape: f32[8,1], index: 7, kind: input, shape index: {}]
  %s8 = inlined_call_operand.hbm [shape: f32[2,8,256], index: 8, kind: output, shape index: {}]
  %s9 = sld [smem:[#allocation0]]
  $region65: #{tpu_custom_call.1} parent=0
    _
  %s11 = ssub.s32 1, %s9
  %s12 = scalar_select 0, %s11, %s9
  $region1: #{tpu_custom_call.1} parent=0
    #allocation2 [shape = 'u8[16384]{0}', space=vmem, size = 0x4000, scoped, tag = 'output window, operand 0']
    #allocation3 [shape = 's32[2]{0}', space=sflag, size = 0x8, scoped, tag = 'scoped memory for tpu_custom_call.1']
    %13 = vsyncpa [#allocation3], 0
    %s14 = scalar_lea.sflag [#allocation3], 1
    %15 = vsyncpa %s14, 0
    loop: start=0, step=1, limit=4
    $region2: #{tpu_custom_call.1} parent=1 // loop_pre_header
      _
    $region3: #{tpu_custom_call.1} parent=1 // loop_header
      %s17 = sphi 0, %s21
      %p18 = scmp.ge.s32.totalorder %s17, 4
      %s27 = sphi 0, %s29
      %s30 = sphi 0, %s27
      %s31 = sphi 0, %s30
      %s47 = sphi 0, %s31
      %s51 = sphi 0, %s51
      %s53 = sphi 0, %s51
      %s54 = sphi 0, %s53
      %s68 = sphi 0, %s54
      %s72 = sphi 0, %s72
      %s74 = sphi 0, %s72
      %s75 = sphi 0, %s74
      %s89 = sphi 0, %s75
      %s93 = sphi 0, %s93
      %s95 = sphi 0, %s93
      %s96 = sphi 0, %s95
      %s110 = sphi 0, %s96
      %s114 = sphi 0, %s114
      %s116 = sphi 0, %s114
      %s117 = sphi 0, %s116
      %s131 = sphi 0, %s117
      %s135 = sphi 0, %s135
      %s137 = sphi 0, %s135
      %s138 = sphi 0, %s137
      %s152 = sphi 0, %s138
      %s156 = sphi 0, %s156
      %s158 = sphi 0, %s156
      %s159 = sphi 0, %s158
      %s173 = sphi 0, %s159
      %s177 = sphi 0, %s177
      %s179 = sphi 0, %s177
      %s180 = sphi 0, %s179
      %s194 = sphi 0, %s180
      %s200 = sphi 0, %s202
      %s203 = sphi 0, %s200
      %s204 = sphi 0, %s203
      %s220 = sphi 0, %s204
    $region4: #{tpu_custom_call.1} parent=1 // loop_header_branch
      %20 = sbr.rel (%p18) target = $region8
    $region5: #{tpu_custom_call.1} parent=1 // loop_body
      %s22 = ssub.s32 %s17, 1
      %s23 = ssub.s32 %s17, 2
      %s24 = sadd.s32 %s17, 1
      %s25 = ssub.s32 %s17, %s24
      %p26 = scmp.eq.s32.totalorder %s25, 0
      %s28 = sadd.s32 %s27, 1
      %s29 = scalar_select %p26, %s27, %s28
      %p32 = pneg %p26
      %p33 = scmp.eq.s32.totalorder %s17, 1
      %p34 = por %p32, %p33
      %p35 = scmp.ne.s32.totalorder %s27, %s30
      %p36 = scmp.eq.s32.totalorder %s17, 0
      %p37 = por %p35, %p36
      %p38 = scmp.ne.s32.totalorder %s27, %s30
      %p39 = scmp.eq.s32.totalorder %s22, 1
      %p40 = por %p38, %p39
      %p41 = scmp.ne.s32.totalorder %s30, %s31
      %p42 = scmp.eq.s32.totalorder %s22, 0
      %p43 = por %p41, %p42
      %p44 = scmp.ne.s32.totalorder %s30, %s31
      %p45 = scmp.eq.s32.totalorder %s23, 1
      %p46 = por %p44, %p45
      %p48 = scmp.ne.s32.totalorder %s31, %s47
      %p49 = scmp.eq.s32.totalorder %s23, 0
      %p50 = por %p48, %p49
      %s52 = sadd.s32 %s51, 1
      %p55 = scmp.eq.s32.totalorder %s17, 1
      %p56 = scmp.ne.s32.totalorder %s51, %s53
      %p57 = scmp.eq.s32.totalorder %s17, 0
      %p58 = por %p56, %p57
      %p59 = scmp.ne.s32.totalorder %s51, %s53
      %p60 = scmp.eq.s32.totalorder %s22, 1
      %p61 = por %p59, %p60
      %p62 = scmp.ne.s32.totalorder %s53, %s54
      %p63 = scmp.eq.s32.totalorder %s22, 0
      %p64 = por %p62, %p63
      %p65 = scmp.ne.s32.totalorder %s53, %s54
      %p66 = scmp.eq.s32.totalorder %s23, 1
      %p67 = por %p65, %p66
      %p69 = scmp.ne.s32.totalorder %s54, %s68
      %p70 = scmp.eq.s32.totalorder %s23, 0
      %p71 = por %p69, %p70
      %s73 = sadd.s32 %s72, 1
      %p76 = scmp.eq.s32.totalorder %s17, 1
      %p77 = scmp.ne.s32.totalorder %s72, %s74
      %p78 = scmp.eq.s32.totalorder %s17, 0
      %p79 = por %p77, %p78
      %p80 = scmp.ne.s32.totalorder %s72, %s74
      %p81 = scmp.eq.s32.totalorder %s22, 1
      %p82 = por %p80, %p81
      %p83 = scmp.ne.s32.totalorder %s74, %s75
      %p84 = scmp.eq.s32.totalorder %s22, 0
      %p85 = por %p83, %p84
      %p86 = scmp.ne.s32.totalorder %s74, %s75
      %p87 = scmp.eq.s32.totalorder %s23, 1
      %p88 = por %p86, %p87
      %p90 = scmp.ne.s32.totalorder %s75, %s89
      %p91 = scmp.eq.s32.totalorder %s23, 0
      %p92 = por %p90, %p91
      %s94 = sadd.s32 %s93, 1
      %p97 = scmp.eq.s32.totalorder %s17, 1
      %p98 = scmp.ne.s32.totalorder %s93, %s95
      %p99 = scmp.eq.s32.totalorder %s17, 0
      %p100 = por %p98, %p99
      %p101 = scmp.ne.s32.totalorder %s93, %s95
      %p102 = scmp.eq.s32.totalorder %s22, 1
      %p103 = por %p101, %p102
      %p104 = scmp.ne.s32.totalorder %s95, %s96
      %p105 = scmp.eq.s32.totalorder %s22, 0
      %p106 = por %p104, %p105
      %p107 = scmp.ne.s32.totalorder %s95, %s96
      %p108 = scmp.eq.s32.totalorder %s23, 1
      %p109 = por %p107, %p108
      %p111 = scmp.ne.s32.totalorder %s96, %s110
      %p112 = scmp.eq.s32.totalorder %s23, 0
      %p113 = por %p111, %p112
      %s115 = sadd.s32 %s114, 1
      %p118 = scmp.eq.s32.totalorder %s17, 1
      %p119 = scmp.ne.s32.totalorder %s114, %s116
      %p120 = scmp.eq.s32.totalorder %s17, 0
      %p121 = por %p119, %p120
      %p122 = scmp.ne.s32.totalorder %s114, %s116
      %p123 = scmp.eq.s32.totalorder %s22, 1
      %p124 = por %p122, %p123
      %p125 = scmp.ne.s32.totalorder %s116, %s117
      %p126 = scmp.eq.s32.totalorder %s22, 0
      %p127 = por %p125, %p126
      %p128 = scmp.ne.s32.totalorder %s116, %s117
      %p129 = scmp.eq.s32.totalorder %s23, 1
      %p130 = por %p128, %p129
      %p132 = scmp.ne.s32.totalorder %s117, %s131
      %p133 = scmp.eq.s32.totalorder %s23, 0
      %p134 = por %p132, %p133
      %s136 = sadd.s32 %s135, 1
      %p139 = scmp.eq.s32.totalorder %s17, 1
      %p140 = scmp.ne.s32.totalorder %s135, %s137
      %p141 = scmp.eq.s32.totalorder %s17, 0
      %p142 = por %p140, %p141
      %p143 = scmp.ne.s32.totalorder %s135, %s137
      %p144 = scmp.eq.s32.totalorder %s22, 1
      %p145 = por %p143, %p144
      %p146 = scmp.ne.s32.totalorder %s137, %s138
      %p147 = scmp.eq.s32.totalorder %s22, 0
      %p148 = por %p146, %p147
      %p149 = scmp.ne.s32.totalorder %s137, %s138
      %p150 = scmp.eq.s32.totalorder %s23, 1
      %p151 = por %p149, %p150
      %p153 = scmp.ne.s32.totalorder %s138, %s152
      %p154 = scmp.eq.s32.totalorder %s23, 0
      %p155 = por %p153, %p154
      %s157 = sadd.s32 %s156, 1
      %p160 = scmp.eq.s32.totalorder %s17, 1
      %p161 = scmp.ne.s32.totalorder %s156, %s158
      %p162 = scmp.eq.s32.totalorder %s17, 0
      %p163 = por %p161, %p162
      %p164 = scmp.ne.s32.totalorder %s156, %s158
      %p165 = scmp.eq.s32.totalorder %s22, 1
      %p166 = por %p164, %p165
      %p167 = scmp.ne.s32.totalorder %s158, %s159
      %p168 = scmp.eq.s32.totalorder %s22, 0
      %p169 = por %p167, %p168
      %p170 = scmp.ne.s32.totalorder %s158, %s159
      %p171 = scmp.eq.s32.totalorder %s23, 1
      %p172 = por %p170, %p171
      %p174 = scmp.ne.s32.totalorder %s159, %s173
      %p175 = scmp.eq.s32.totalorder %s23, 0
      %p176 = por %p174, %p175
      %s178 = sadd.s32 %s177, 1
      %p181 = scmp.eq.s32.totalorder %s17, 1
      %p182 = scmp.ne.s32.totalorder %s177, %s179
      %p183 = scmp.eq.s32.totalorder %s17, 0
      %p184 = por %p182, %p183
      %p185 = scmp.ne.s32.totalorder %s177, %s179
      %p186 = scmp.eq.s32.totalorder %s22, 1
      %p187 = por %p185, %p186
      %p188 = scmp.ne.s32.totalorder %s179, %s180
      %p189 = scmp.eq.s32.totalorder %s22, 0
      %p190 = por %p188, %p189
      %p191 = scmp.ne.s32.totalorder %s179, %s180
      %p192 = scmp.eq.s32.totalorder %s23, 1
      %p193 = por %p191, %p192
      %p195 = scmp.ne.s32.totalorder %s180, %s194
      %p196 = scmp.eq.s32.totalorder %s23, 0
      %p197 = por %p195, %p196
      %s198 = ssub.s32 %s17, %s24
      %p199 = scmp.eq.s32.totalorder %s198, 0
      %s201 = sadd.s32 %s200, 1
      %s202 = scalar_select %p199, %s200, %s201
      %p205 = pneg %p199
      %p206 = scmp.eq.s32.totalorder %s17, 1
      %p207 = por %p205, %p206
      %p208 = scmp.ne.s32.totalorder %s200, %s203
      %p209 = scmp.eq.s32.totalorder %s17, 0
      %p210 = por %p208, %p209
      %p211 = scmp.ne.s32.totalorder %s200, %s203
      %p212 = scmp.eq.s32.totalorder %s22, 1
      %p213 = por %p211, %p212
      %p214 = scmp.ne.s32.totalorder %s203, %s204
      %p215 = scmp.eq.s32.totalorder %s22, 0
      %p216 = por %p214, %p215
      %p217 = scmp.ne.s32.totalorder %s203, %s204
      %p218 = scmp.eq.s32.totalorder %s23, 1
      %p219 = por %p217, %p218
      %p221 = scmp.ne.s32.totalorder %s204, %s220
      %p222 = scmp.eq.s32.totalorder %s23, 0
      %p223 = por %p221, %p222
      %p224 = scmp.le.s32.totalorder 1, %s17
      %p225 = scmp.lt.s32.totalorder %s17, 3
      %p226 = pnand %p224, %p225
      %p227 = pneg %p226
      // Predicated region
      $region9: #{tpu_custom_call.1} parent=5 // pred_check
        _
      $region10: #{tpu_custom_call.1} parent=5 // pred_check_branch
        %229 = sbr.rel (%p226) target = $region12
      $region11: #{tpu_custom_call.1} parent=5 // pred_region
        %s230 = ssub.s32 %s17, 1
        // Predicated region
        $region13: #{tpu_custom_call.1} parent=11 // pred_check
          %p231 = pneg %p64
        $region14: #{tpu_custom_call.1} parent=11 // pred_check_branch
          %233 = sbr.rel (%p231) target = $region16
        $region15: #{tpu_custom_call.1} parent=11 // pred_region
          _
        $region16: #{tpu_custom_call.1} parent=11 // pred_fallthru
          _
        // Predicated region
        $region17: #{tpu_custom_call.1} parent=11 // pred_check
          %p234 = pneg %p85
        $region18: #{tpu_custom_call.1} parent=11 // pred_check_branch
          %236 = sbr.rel (%p234) target = $region20
        $region19: #{tpu_custom_call.1} parent=11 // pred_region
          _
        $region20: #{tpu_custom_call.1} parent=11 // pred_fallthru
          _
        // Predicated region
        $region21: #{tpu_custom_call.1} parent=11 // pred_check
          %p237 = pneg %p106
        $region22: #{tpu_custom_call.1} parent=11 // pred_check_branch
          %239 = sbr.rel (%p237) target = $region24
        $region23: #{tpu_custom_call.1} parent=11 // pred_region
          _
        $region24: #{tpu_custom_call.1} parent=11 // pred_fallthru
          _
        // Predicated region
        $region25: #{tpu_custom_call.1} parent=11 // pred_check
          %p240 = pneg %p127
        $region26: #{tpu_custom_call.1} parent=11 // pred_check_branch
          %242 = sbr.rel (%p240) target = $region28
        $region27: #{tpu_custom_call.1} parent=11 // pred_region
          _
        $region28: #{tpu_custom_call.1} parent=11 // pred_fallthru
          _
        // Predicated region
        $region29: #{tpu_custom_call.1} parent=11 // pred_check
          %p243 = pneg %p148
        $region30: #{tpu_custom_call.1} parent=11 // pred_check_branch
          %245 = sbr.rel (%p243) target = $region32
        $region31: #{tpu_custom_call.1} parent=11 // pred_region
          _
        $region32: #{tpu_custom_call.1} parent=11 // pred_fallthru
          _
        // Predicated region
        $region33: #{tpu_custom_call.1} parent=11 // pred_check
          %p246 = pneg %p169
        $region34: #{tpu_custom_call.1} parent=11 // pred_check_branch
          %248 = sbr.rel (%p246) target = $region36
        $region35: #{tpu_custom_call.1} parent=11 // pred_region
          _
        $region36: #{tpu_custom_call.1} parent=11 // pred_fallthru
          _
        // Predicated region
        $region37: #{tpu_custom_call.1} parent=11 // pred_check
          %p249 = pneg %p190
        $region38: #{tpu_custom_call.1} parent=11 // pred_check_branch
          %251 = sbr.rel (%p249) target = $region40
        $region39: #{tpu_custom_call.1} parent=11 // pred_region
          _
        $region40: #{tpu_custom_call.1} parent=11 // pred_fallthru
          _
      $region12: #{tpu_custom_call.1} parent=5 // pred_fallthru
        _
      %p252 = scmp.lt.s32.totalorder %s17, 2
      // Predicated region
      $region41: #{tpu_custom_call.1} parent=5 // pred_check
        %p253 = pneg %p252
      $region42: #{tpu_custom_call.1} parent=5 // pred_check_branch
        %255 = sbr.rel (%p253) target = $region44
      $region43: #{tpu_custom_call.1} parent=5 // pred_region
        // Predicated region
        $region45: #{tpu_custom_call.1} parent=43 // pred_check
          %p256 = pneg %p37
        $region46: #{tpu_custom_call.1} parent=43 // pred_check_branch
          %258 = sbr.rel (%p256) target = $region48
        $region47: #{tpu_custom_call.1} parent=43 // pred_region
          %p259 = scmp.lt.s32.totalorder %s17, 1
          %s260 = scalar_select %p259, %s17, 1
          %s261 = smul.addr %s260, 2
          %s262 = smul.addr %s261, 4
          %s263 = scalar_lea.vmem %s0, %s262
        $region48: #{tpu_custom_call.1} parent=43 // pred_fallthru
          _
      $region44: #{tpu_custom_call.1} parent=5 // pred_fallthru
        _
      %p264 = scmp.le.s32.totalorder 1, %s17
      %p265 = scmp.lt.s32.totalorder %s17, 3
      %p266 = pnand %p264, %p265
      %p267 = pneg %p266
      // Predicated region
      $region49: #{tpu_custom_call.1} parent=5 // pred_check
        _
      $region50: #{tpu_custom_call.1} parent=5 // pred_check_branch
        %269 = sbr.rel (%p266) target = $region52
      $region51: #{tpu_custom_call.1} parent=5 // pred_region
        %s270 = ssub.s32 %s17, 1
        %p271 = scmp.lt.s32.totalorder %s22, 1
        %s272 = scalar_select %p271, %s22, 1
        %s273 = smul.addr %s272, 2
        %s274 = smul.addr %s273, 4
        %s275 = scalar_lea.vmem %s0, %s274
        %p276 = pneg %p43
        %p277 = pneg %p40
        %p278 = pneg %p64
        %p279 = pneg %p61
        %p280 = pneg %p85
        %p281 = pneg %p82
        %p282 = pneg %p106
        %p283 = pneg %p103
        %p284 = pneg %p127
        %p285 = pneg %p124
        %p286 = pneg %p148
        %p287 = pneg %p145
        %p288 = pneg %p169
        %p289 = pneg %p166
        %p290 = pneg %p190
        %p291 = pneg %p187
        %p292 = pneg %p216
        %p293 = pneg %p213
        %s294 = sand.u32 %s203, 1
        %s295 = scalar_lea.sflag [#allocation3], %s294
        %s296 = sand.u32 %s203, 1
        %s297 = smul.addr %s296, 16
        %s298 = scalar_lea.vmem [#allocation2], %s297
        %p299 = scmp.lt.s32.totalorder %s22, 1
        %s300 = scalar_select %p299, %s22, 1
        %s301 = smul.addr %s300, 2
        %s302 = smul.addr %s301, 4
        %s303 = scalar_lea.vmem %s0, %s302
        %v304 = vld [vmem:[%s303] sm:$0xff]
        %v305 = vld [vmem:[%s1] sm:$0xff]
        %v306 = vld [vmem:[%s2] sm:$0xff]
        %308 = vset.pattern.permute.xlu0 0
        %309 = vperm.xlu0 %308, %v306
        %v310 = vpop.permute.xlu0 %309
        %v313 = vcombine.high %v304, %v304
        %vm314 = vcmask 31744
        %v316 = vsel %vm314, %v305, 0
        %vm318 = vcmask 1043456
        %v319 = vsel %vm318, %v304, 0
        %v321 = vsel %vm318, %v313, 0
        %323 = vmatprep.subr.mxu0 0.0
        %324 = vmatpush1.msra.mxu0 0.0
        %325 = vmatprep.subr.mxu0 0.0
        %326 = vmatpush1.msra.mxu0 0.0
        %327 = vmatprep.subr.mxu0 0.0
        %328 = vmatpush1.msra.mxu0 0.0
        %329 = vmatprep.subr.mxu0 0.0
        %330 = vmatpush1.msra.mxu0 0.0
        %331 = vmatprep.subr.mxu0 0.0
        %332 = vmatpush1.msra.mxu0 0.0
        %333 = vmatprep.subr.mxu0 0.0
        %334 = vmatpush1.msra.mxu0 0.0
        %335 = vmatprep.subr.mxu0 0.0
        %336 = vmatpush1.msra.mxu0 0.0
        %337 = vmatprep.subr.mxu0 0.0
        %338 = vmatpush1.msra.mxu0 0.0
        %339 = vmatprep.subr.mxu0 0.0
        %340 = vmatpush1.msra.mxu0 0.0
        %341 = vmatprep.subr.mxu0 0.0
        %342 = vmatpush1.msra.mxu0 0.0
        %343 = vmatprep.subr.mxu0 0.0
        %344 = vmatpush1.msra.mxu0 0.0
        %345 = vmatprep.subr.mxu0 0.0
        %346 = vmatpush1.msra.mxu0 0.0
        %347 = vmatprep.subr.mxu0 0.0
        %348 = vmatpush1.msra.mxu0 0.0
        %349 = vmatprep.subr.mxu0 0.0
        %350 = vmatpush1.msra.mxu0 0.0
        %351 = vmatprep.subr.mxu0 0.0
        %352 = vmatpush1.msra.mxu0 0.0
        %353 = vmatprep.subr.mxu0 %v321
        %354 = vmatpush1.msra.mxu0 %v319
        %355 = vmatprep.subr.mxu0 0.0
        %356 = vmatpush2.msra.mxu0 0.0
        %357 = vmatprep.subr.mxu0 0.0
        %358 = vmatpush2.msra.mxu0 0.0
        %359 = vmatprep.subr.mxu0 0.0
        %360 = vmatpush2.msra.mxu0 0.0
        %361 = vmatprep.subr.mxu0 0.0
        %362 = vmatpush2.msra.mxu0 0.0
        %363 = vmatprep.subr.mxu0 0.0
        %364 = vmatpush2.msra.mxu0 0.0
        %365 = vmatprep.subr.mxu0 0.0
        %366 = vmatpush2.msra.mxu0 0.0
        %367 = vmatprep.subr.mxu0 0.0
        %368 = vmatpush2.msra.mxu0 0.0
        %369 = vmatprep.subr.mxu0 0.0
        %370 = vmatpush2.msra.mxu0 0.0
        %371 = vmatprep.subr.mxu0 0.0
        %372 = vmatpush2.msra.mxu0 0.0
        %373 = vmatprep.subr.mxu0 0.0
        %374 = vmatpush2.msra.mxu0 0.0
        %375 = vmatprep.subr.mxu0 0.0
        %376 = vmatpush2.msra.mxu0 0.0
        %377 = vmatprep.subr.mxu0 0.0
        %378 = vmatpush2.msra.mxu0 0.0
        %379 = vmatprep.subr.mxu0 0.0
        %380 = vmatpush2.msra.mxu0 0.0
        %381 = vmatprep.subr.mxu0 0.0
        %382 = vmatpush2.msra.mxu0 0.0
        %383 = vmatprep.subr.mxu0 0.0
        %384 = vmatpush2.msra.mxu0 0.0
        %385 = vmatprep.subr.mxu0 0.0
        %386 = vmatpush2.msra.mxu0 0.0
        %387 = vmatprep.mubr.f32.mxu0 0.0
        %388 = vmatmul.mubr.f32.gmra.mxu0 %v316
        %v389 = vpop.f32.mrf.mxu0
        %v390 = vadd.f32 %v310, %v389
        %v391 = vpop.f32.mrf.mxu0
        %v392 = vadd.f32 %v310, %v391
        %393 = vdwg.mxu0
        %v394 = vmax.f32 %v390, 0.0
        %v395 = vmax.f32 %v392, 0.0
        %v396 = vmin.f32 %v394, 6.0
        %v397 = vmin.f32 %v395, 6.0
        %v399 = vsel %vm318, %v304, 0.0
        %v400 = vsel %vm318, %v313, 0.0
        %v401 = vadd.f32 %v399, %v400
        %402 = vadd.xlane.f32.xlu0 %v401
        %v403 = vpop.xlane.xlu0 %402
        %v404 = vmul.f32 %v403, 0.00390625
        %v405 = vld [vmem:[%s3] sm:$0xff]
        %v406 = vld [vmem:[%s4] sm:$0xff]
        %v408 = vsel %vm314, %v405, 0
        %v411 = vsel %vm318, %v404, 0
        %413 = vmatprep.subr.mxu0 0.0
        %414 = vmatpush1.msra.mxu0 0.0
        %415 = vmatprep.subr.mxu0 0.0
        %416 = vmatpush1.msra.mxu0 0.0
        %417 = vmatprep.subr.mxu0 0.0
        %418 = vmatpush1.msra.mxu0 0.0
        %419 = vmatprep.subr.mxu0 0.0
        %420 = vmatpush1.msra.mxu0 0.0
        %421 = vmatprep.subr.mxu0 0.0
        %422 = vmatpush1.msra.mxu0 0.0
        %423 = vmatprep.subr.mxu0 0.0
        %424 = vmatpush1.msra.mxu0 0.0
        %425 = vmatprep.subr.mxu0 0.0
        %426 = vmatpush1.msra.mxu0 0.0
        %427 = vmatprep.subr.mxu0 0.0
        %428 = vmatpush1.msra.mxu0 0.0
        %429 = vmatprep.subr.mxu0 0.0
        %430 = vmatpush1.msra.mxu0 0.0
        %431 = vmatprep.subr.mxu0 0.0
        %432 = vmatpush1.msra.mxu0 0.0
        %433 = vmatprep.subr.mxu0 0.0
        %434 = vmatpush1.msra.mxu0 0.0
        %435 = vmatprep.subr.mxu0 0.0
        %436 = vmatpush1.msra.mxu0 0.0
        %437 = vmatprep.subr.mxu0 0.0
        %438 = vmatpush1.msra.mxu0 0.0
        %439 = vmatprep.subr.mxu0 0.0
        %440 = vmatpush1.msra.mxu0 0.0
        %441 = vmatprep.subr.mxu0 0.0
        %442 = vmatpush1.msra.mxu0 0.0
        %443 = vmatprep.subr.mxu0 0.0
        %444 = vmatpush1.msra.mxu0 %v411
        %445 = vmatprep.subr.mxu0 0.0
        %446 = vmatpush2.msra.mxu0 0.0
        %447 = vmatprep.subr.mxu0 0.0
        %448 = vmatpush2.msra.mxu0 0.0
        %449 = vmatprep.subr.mxu0 0.0
        %450 = vmatpush2.msra.mxu0 0.0
        %451 = vmatprep.subr.mxu0 0.0
        %452 = vmatpush2.msra.mxu0 0.0
        %453 = vmatprep.subr.mxu0 0.0
        %454 = vmatpush2.msra.mxu0 0.0
        %455 = vmatprep.subr.mxu0 0.0
        %456 = vmatpush2.msra.mxu0 0.0
        %457 = vmatprep.subr.mxu0 0.0
        %458 = vmatpush2.msra.mxu0 0.0
        %459 = vmatprep.subr.mxu0 0.0
        %460 = vmatpush2.msra.mxu0 0.0
        %461 = vmatprep.subr.mxu0 0.0
        %462 = vmatpush2.msra.mxu0 0.0
        %463 = vmatprep.subr.mxu0 0.0
        %464 = vmatpush2.msra.mxu0 0.0
        %465 = vmatprep.subr.mxu0 0.0
        %466 = vmatpush2.msra.mxu0 0.0
        %467 = vmatprep.subr.mxu0 0.0
        %468 = vmatpush2.msra.mxu0 0.0
        %469 = vmatprep.subr.mxu0 0.0
        %470 = vmatpush2.msra.mxu0 0.0
        %471 = vmatprep.subr.mxu0 0.0
        %472 = vmatpush2.msra.mxu0 0.0
        %473 = vmatprep.subr.mxu0 0.0
        %474 = vmatpush2.msra.mxu0 0.0
        %475 = vmatprep.subr.mxu0 0.0
        %476 = vmatpush2.msra.mxu0 0.0
        %477 = vmatprep.mubr.f32.mxu0 0.0
        %478 = vmatmul.mubr.f32.gmra.mxu0 %v408
        %v479 = vpop.f32.mrf.mxu0
        %v480 = vadd.f32 %v406, %v479
        %v481 = vpop.f32.mrf.mxu0
        %482 = vdwg.mxu0
        %v483 = vmax.f32 %v480, 0.0
        %v484 = vmin.f32 %v483, 6.0
        %v485 = vld [vmem:[%s7] sm:$0xff]
        %v486 = vld [vmem:[%s6] sm:$0xff]
        %vm487 = vcmask 64512
        %v489 = vsel %vm487, %v486, 0
        %491 = vmatprep.subr.mxu0 0.0
        %492 = vmatpush1.msra.mxu0 0.0
        %493 = vmatprep.subr.mxu0 0.0
        %494 = vmatpush1.msra.mxu0 0.0
        %495 = vmatprep.subr.mxu0 0.0
        %496 = vmatpush1.msra.mxu0 0.0
        %497 = vmatprep.subr.mxu0 0.0
        %498 = vmatpush1.msra.mxu0 0.0
        %499 = vmatprep.subr.mxu0 0.0
        %500 = vmatpush1.msra.mxu0 0.0
        %501 = vmatprep.subr.mxu0 0.0
        %502 = vmatpush1.msra.mxu0 0.0
        %503 = vmatprep.subr.mxu0 0.0
        %504 = vmatpush1.msra.mxu0 0.0
        %505 = vmatprep.subr.mxu0 0.0
        %506 = vmatpush1.msra.mxu0 0.0
        %507 = vmatprep.subr.mxu0 0.0
        %508 = vmatpush1.msra.mxu0 0.0
        %509 = vmatprep.subr.mxu0 0.0
        %510 = vmatpush1.msra.mxu0 0.0
        %511 = vmatprep.subr.mxu0 0.0
        %512 = vmatpush1.msra.mxu0 0.0
        %513 = vmatprep.subr.mxu0 0.0
        %514 = vmatpush1.msra.mxu0 0.0
        %515 = vmatprep.subr.mxu0 0.0
        %516 = vmatpush1.msra.mxu0 0.0
        %517 = vmatprep.subr.mxu0 0.0
        %518 = vmatpush1.msra.mxu0 0.0
        %519 = vmatprep.subr.mxu0 0.0
        %520 = vmatpush1.msra.mxu0 0.0
        %521 = vmatprep.subr.mxu0 0.0
        %522 = vmatpush1.msra.mxu0 %v484
        %523 = vmatprep.subr.mxu0 0.0
        %524 = vmatpush2.msra.mxu0 0.0
        %525 = vmatprep.subr.mxu0 0.0
        %526 = vmatpush2.msra.mxu0 0.0
        %527 = vmatprep.subr.mxu0 0.0
        %528 = vmatpush2.msra.mxu0 0.0
        %529 = vmatprep.subr.mxu0 0.0
        %530 = vmatpush2.msra.mxu0 0.0
        %531 = vmatprep.subr.mxu0 0.0
        %532 = vmatpush2.msra.mxu0 0.0
        %533 = vmatprep.subr.mxu0 0.0
        %534 = vmatpush2.msra.mxu0 0.0
        %535 = vmatprep.subr.mxu0 0.0
        %536 = vmatpush2.msra.mxu0 0.0
        %537 = vmatprep.subr.mxu0 0.0
        %538 = vmatpush2.msra.mxu0 0.0
        %539 = vmatprep.subr.mxu0 0.0
        %540 = vmatpush2.msra.mxu0 0.0
        %541 = vmatprep.subr.mxu0 0.0
        %542 = vmatpush2.msra.mxu0 0.0
        %543 = vmatprep.subr.mxu0 0.0
        %544 = vmatpush2.msra.mxu0 0.0
        %545 = vmatprep.subr.mxu0 0.0
        %546 = vmatpush2.msra.mxu0 0.0
        %547 = vmatprep.subr.mxu0 0.0
        %548 = vmatpush2.msra.mxu0 0.0
        %549 = vmatprep.subr.mxu0 0.0
        %550 = vmatpush2.msra.mxu0 0.0
        %551 = vmatprep.subr.mxu0 0.0
        %552 = vmatpush2.msra.mxu0 0.0
        %553 = vmatprep.subr.mxu0 0.0
        %554 = vmatpush2.msra.mxu0 0.0
        %555 = vmatprep.mubr.f32.mxu0 0.0
        %556 = vmatmul.mubr.f32.gmra.mxu0 %v489
        %v557 = vpop.f32.mrf.mxu0
        %v558 = vadd.f32 0.0, %v557
        %v559 = vpop.f32.mrf.mxu0
        %560 = vdwg.mxu0
        %v561 = vadd.f32 %v485, %v558
        %v562 = vld [vmem:[%s5] sm:$0xff]
        %564 = vset.pattern.permute.xlu0 0
        %565 = vperm.xlu0 %564, %v561
        %v566 = vpop.permute.xlu0 %565
        %v569 = vsel %vm487, %v562, 0
        %571 = vmatprep.subr.mxu0 0.0
        %572 = vmatpush1.msra.mxu0 0.0
        %573 = vmatprep.subr.mxu0 0.0
        %574 = vmatpush1.msra.mxu0 0.0
        %575 = vmatprep.subr.mxu0 0.0
        %576 = vmatpush1.msra.mxu0 0.0
        %577 = vmatprep.subr.mxu0 0.0
        %578 = vmatpush1.msra.mxu0 0.0
        %579 = vmatprep.subr.mxu0 0.0
        %580 = vmatpush1.msra.mxu0 0.0
        %581 = vmatprep.subr.mxu0 0.0
        %582 = vmatpush1.msra.mxu0 0.0
        %583 = vmatprep.subr.mxu0 0.0
        %584 = vmatpush1.msra.mxu0 0.0
        %585 = vmatprep.subr.mxu0 0.0
        %586 = vmatpush1.msra.mxu0 0.0
        %587 = vmatprep.subr.mxu0 0.0
        %588 = vmatpush1.msra.mxu0 0.0
        %589 = vmatprep.subr.mxu0 0.0
        %590 = vmatpush1.msra.mxu0 0.0
        %591 = vmatprep.subr.mxu0 0.0
        %592 = vmatpush1.msra.mxu0 0.0
        %593 = vmatprep.subr.mxu0 0.0
        %594 = vmatpush1.msra.mxu0 0.0
        %595 = vmatprep.subr.mxu0 0.0
        %596 = vmatpush1.msra.mxu0 0.0
        %597 = vmatprep.subr.mxu0 0.0
        %598 = vmatpush1.msra.mxu0 0.0
        %599 = vmatprep.subr.mxu0 0.0
        %600 = vmatpush1.msra.mxu0 0.0
        %601 = vmatprep.subr.mxu0 %v397
        %602 = vmatpush1.msra.mxu0 %v396
        %603 = vmatprep.subr.mxu0 0.0
        %604 = vmatpush2.msra.mxu0 0.0
        %605 = vmatprep.subr.mxu0 0.0
        %606 = vmatpush2.msra.mxu0 0.0
        %607 = vmatprep.subr.mxu0 0.0
        %608 = vmatpush2.msra.mxu0 0.0
        %609 = vmatprep.subr.mxu0 0.0
        %610 = vmatpush2.msra.mxu0 0.0
        %611 = vmatprep.subr.mxu0 0.0
        %612 = vmatpush2.msra.mxu0 0.0
        %613 = vmatprep.subr.mxu0 0.0
        %614 = vmatpush2.msra.mxu0 0.0
        %615 = vmatprep.subr.mxu0 0.0
        %616 = vmatpush2.msra.mxu0 0.0
        %617 = vmatprep.subr.mxu0 0.0
        %618 = vmatpush2.msra.mxu0 0.0
        %619 = vmatprep.subr.mxu0 0.0
        %620 = vmatpush2.msra.mxu0 0.0
        %621 = vmatprep.subr.mxu0 0.0
        %622 = vmatpush2.msra.mxu0 0.0
        %623 = vmatprep.subr.mxu0 0.0
        %624 = vmatpush2.msra.mxu0 0.0
        %625 = vmatprep.subr.mxu0 0.0
        %626 = vmatpush2.msra.mxu0 0.0
        %627 = vmatprep.subr.mxu0 0.0
        %628 = vmatpush2.msra.mxu0 0.0
        %629 = vmatprep.subr.mxu0 0.0
        %630 = vmatpush2.msra.mxu0 0.0
        %631 = vmatprep.subr.mxu0 0.0
        %632 = vmatpush2.msra.mxu0 0.0
        %633 = vmatprep.subr.mxu0 0.0
        %634 = vmatpush2.msra.mxu0 0.0
        %635 = vmatprep.mubr.f32.mxu0 0.0
        %636 = vmatmul.mubr.f32.gmra.mxu0 %v569
        %v637 = vpop.f32.mrf.mxu0
        %v638 = vadd.f32 %v566, %v637
        %v639 = vpop.f32.mrf.mxu0
        %v640 = vadd.f32 %v566, %v639
        %641 = vdwg.mxu0
        %v642 = vmax.f32 %v638, 0.0
        %v643 = vmax.f32 %v640, 0.0
        %v644 = vmin.f32 %v642, 6.0
        %v645 = vmin.f32 %v643, 6.0
        %646 = vst [vmem:[%s298] sm:$0xff] %v644
        %647 = vst [vmem:[%s298 + $0x8] sm:$0xff] %v645
        %s648 = sand.u32 %s203, 1
        %s649 = scalar_lea.sflag [#allocation3], %s648
        %s650 = sand.u32 %s203, 1
        %s651 = smul.addr %s650, 16
        %s652 = scalar_lea.vmem [#allocation2], %s651
        // Predicated region
        $region53: #{tpu_custom_call.1} parent=51 // pred_check
          %p653 = pneg %p213
        $region54: #{tpu_custom_call.1} parent=51 // pred_check_branch
          %655 = sbr.rel (%p653) target = $region56
        $region55: #{tpu_custom_call.1} parent=51 // pred_region
          %s657 = ssub.s32 256, 256
          %658 = vsyncadd %s649, %s657
          %s659 = smul.addr %s22, 2
          %s660 = smul.addr %s659, 128
          %s661 = scalar_lea.hbm %s8, %s660
          %s663 = sshll.u32 %s652, 4
          %s664 = int_to_ptr.vmem [resolvable:$true] %s663
          %666 = dma.vmem_to_hbm [thread:$0]  %s664, 256, %s661, %s649
        $region56: #{tpu_custom_call.1} parent=51 // pred_fallthru
          _
      $region52: #{tpu_custom_call.1} parent=5 // pred_fallthru
        _
      %p667 = scmp.le.s32.totalorder 2, %s17
      // Predicated region
      $region57: #{tpu_custom_call.1} parent=5 // pred_check
        %p668 = pneg %p667
      $region58: #{tpu_custom_call.1} parent=5 // pred_check_branch
        %670 = sbr.rel (%p668) target = $region60
      $region59: #{tpu_custom_call.1} parent=5 // pred_region
        %s671 = ssub.s32 %s17, 2
        // Predicated region
        $region61: #{tpu_custom_call.1} parent=59 // pred_check
          %p672 = pneg %p219
        $region62: #{tpu_custom_call.1} parent=59 // pred_check_branch
          %674 = sbr.rel (%p672) target = $region64
        $region63: #{tpu_custom_call.1} parent=59 // pred_region
          %s675 = sand.u32 %s204, 1
          %s676 = scalar_lea.sflag [#allocation3], %s675
          %s677 = sand.u32 %s204, 1
          %s678 = smul.addr %s677, 16
          %s679 = scalar_lea.vmem [#allocation2], %s678
          %680 = dma.done %s676, 256
        $region64: #{tpu_custom_call.1} parent=59 // pred_fallthru
          _
      $region60: #{tpu_custom_call.1} parent=5 // pred_fallthru
        _
    $region6: #{tpu_custom_call.1} parent=1 // loop_footer
      %s21 = sadd.s32 1, %s17
    $region7: #{tpu_custom_call.1} parent=1 // loop_footer_branch
      %16 = sbr.rel target = $region3
    $region8: #{tpu_custom_call.1} parent=1 // loop_exit
      _
    %681 = vsyncpa [#allocation3], 1
    %s682 = scalar_lea.sflag [#allocation3], 1
    %683 = vsyncpa %s682, 1

</llo_original>
